<compile_context>
chip_gen: v7x
topology: tpu7x:2x2x1
jax: 0.10.0
libtpu: 0.0.40
codegen_flags: <defaults>
</compile_context>

<pallas_src>
import functools

import jax
import jax.numpy as jnp
from jax import lax
from jax.experimental import pallas as pl
from jax.experimental.pallas import tpu as pltpu


def _round_up(x, m):
    return (x + m - 1) // m * m


def encoder_cnn_kernel(ids_ref, emb_ref, w1_ref, b1_ref, w2_ref, b2_ref, o_ref,
                       *, S, Sp, Hp, tb):
    """One grid step processes `tb` batch elements (tb*Sp rows). Grid = (shard, batch_tile)."""
    R = tb * Sp
    V = emb_ref.shape[0]

    # Row-position masks (built once, reused by both convs).
    row_in_seq = lax.broadcasted_iota(jnp.int32, (R, 1), 0) % Sp
    first_row = row_in_seq == 0
    last_row = row_in_seq == (Sp - 1)

    # ---- embedding gather: one-hot(ids) @ table on the MXU (bf16 in / f32 acc) ----
    # TODO(synk): for non-toy vocabularies replace with a scalar-prefetch DMA row-gather
    # so the table never has to be VMEM-resident.
    ids = ids_ref[...]                                                     # (R, 1) int32
    onehot = (lax.broadcasted_iota(jnp.int32, (R, V), 1) == ids).astype(jnp.bfloat16)
    x = jnp.dot(onehot, emb_ref[...], preferred_element_type=jnp.float32)  # (R, C2p) f32
    if Sp != S:   # zero padded sequence positions so they cannot leak through the conv taps
        x = jnp.where(row_in_seq < S, x, 0.0)
    x = x.astype(jnp.bfloat16)

    def conv3_relu(xin_bf16, w_ref, b_ref):
        # One wide matmul against [W0^T | W1^T | W2^T]; tap shifts are XLU rolls masked
        # at per-batch-element sequence boundaries (== the zero padding of Conv1d(p=1)).
        y = jnp.dot(xin_bf16, w_ref[...], preferred_element_type=jnp.float32)  # (R, 3*Hp)
        left = y[:, 0:Hp]             # W0 x[s]  -> contributes to out[s+1]
        mid = y[:, Hp:2 * Hp]         # W1 x[s]  -> out[s]
        right = y[:, 2 * Hp:3 * Hp]   # W2 x[s]  -> out[s-1]
        sl = jnp.where(first_row, 0.0, pltpu.roll(left, shift=1, axis=0))
        sr = jnp.where(last_row, 0.0, pltpu.roll(right, shift=R - 1, axis=0))
        return jnp.maximum(mid + b_ref[...] + sl + sr, 0.0)               # f32, in vregs

    h1 = conv3_relu(x, w1_ref, b1_ref)                                     # (R, Hp) f32
    if Sp != S:
        h1 = jnp.where(row_in_seq < S, h1, 0.0)
    h2 = conv3_relu(h1.astype(jnp.bfloat16), w2_ref, b2_ref)               # (R, Hp) f32

    # Per-tile partial batch sum (sublane reduction), then grid-axis accumulation.
    partial = h2.reshape(tb, Sp, Hp).sum(axis=0) if tb > 1 else h2

    @pl.when(pl.program_id(1) == 0)
    def _():
        o_ref[...] = jnp.zeros_like(o_ref)

    o_ref[...] += partial


def encoder_cnn(x_ids, emb_table, w1, b1, w2, b2, *, batch_tile=None):
    """x_ids: (B, S) int ids. emb_table: (V, 2H). Conv weights in PyTorch layout (out, in, 3)."""
    B, S = x_ids.shape
    V, C2 = emb_table.shape
    H = w1.shape[0]
    LANE, SUB = 128, 8
    Hp = _round_up(H, LANE)
    C2p = _round_up(C2, LANE)
    Sp = _round_up(S, SUB)

    # Batch tiling: tb batch elements per grid step (tb divides B), ~512 rows/step target.
    tb = max(1, min(B, (512 // Sp) if batch_tile is None else batch_tile))
    while B % tb:
        tb -= 1
    num_tiles = B // tb
    nc = 2 if num_tiles % 2 == 0 else 1   # independent shard axis (v7x: one per TensorCore)
    steps = num_tiles // nc
    R = tb * Sp

    # --- parameter re-layout (params only; activations never round-trip HBM) ---
    emb_p = jnp.zeros((V, C2p), jnp.bfloat16).at[:, :C2].set(emb_table.astype(jnp.bfloat16))

    def fuse_taps(w, cin_p):  # (Cout, Cin, 3) -> (cin_p, 3*Hp) = [W0^T | W1^T | W2^T]
        cout, cin, _ = w.shape
        wcat = jnp.zeros((cin_p, 3 * Hp), jnp.float32)
        for t in range(3):
            wcat = wcat.at[:cin, t * Hp:t * Hp + cout].set(w[:, :, t].astype(jnp.float32).T)
        return wcat.astype(jnp.bfloat16)

    w1cat = fuse_taps(w1, C2p)                                 # (C2p, 3*Hp) bf16
    w2cat = fuse_taps(w2, Hp)                                  # (Hp,  3*Hp) bf16
    b1p = jnp.zeros((1, Hp), jnp.float32).at[0, :H].set(b1.astype(jnp.float32))
    b2p = jnp.zeros((1, Hp), jnp.float32).at[0, :H].set(b2.astype(jnp.float32))

    ids = x_ids.astype(jnp.int32)
    if Sp != S:
        ids = jnp.pad(ids, ((0, 0), (0, Sp - S)))
    ids = ids.reshape(B * Sp, 1)

    # VMEM budget from the actual per-step footprint (+ double-buffering & headroom).
    weight_bytes = emb_p.size * 2 + w1cat.size * 2 + w2cat.size * 2 + (b1p.size + b2p.size) * 4
    block_bytes = 2 * (R * 4) + 2 * (Sp * Hp * 4)
    vmem_limit = int(min(64 << 20, max(8 << 20, 2 * weight_bytes + 2 * block_bytes + (4 << 20))))

    kernel = functools.partial(encoder_cnn_kernel, S=S, Sp=Sp, Hp=Hp, tb=tb)

    out_p = pl.pallas_call(
        kernel,
        out_shape=jax.ShapeDtypeStruct((nc, Sp, Hp), jnp.float32),
        grid_spec=pltpu.PrefetchScalarGridSpec(
            num_scalar_prefetch=0,
            grid=(nc, steps),
            in_specs=[
                pl.BlockSpec((R, 1), lambda c, b: (c * steps + b, 0)),    # ids tile (streamed)
                pl.BlockSpec((V, C2p), lambda c, b: (0, 0)),              # emb table (resident)
                pl.BlockSpec((C2p, 3 * Hp), lambda c, b: (0, 0)),         # conv1 taps (resident)
                pl.BlockSpec((1, Hp), lambda c, b: (0, 0)),               # b1
                pl.BlockSpec((Hp, 3 * Hp), lambda c, b: (0, 0)),          # conv2 taps (resident)
                pl.BlockSpec((1, Hp), lambda c, b: (0, 0)),               # b2
            ],
            out_specs=pl.BlockSpec((None, Sp, Hp), lambda c, b: (c, 0, 0)),  # per-shard accumulator
        ),
        compiler_params=pltpu.CompilerParams(
            dimension_semantics=("parallel", "arbitrary"),
            vmem_limit_bytes=vmem_limit),
    )(ids, emb_p, w1cat, b1p, w2cat, b2p)

    out = out_p.sum(axis=0)[:S, :H]    # reduce shard partial sums, strip lane/sublane padding
    return out[None]


# ---------------------------- pure-JAX references ----------------------------

def _conv1d_same(x, w, b, precision):
    xp = jnp.pad(x, ((0, 0), (1, 1), (0, 0)))
    y = (jnp.einsum('bsi,oi->bso', xp[:, 0:-2], w[:, :, 0], precision=precision)
         + jnp.einsum('bsi,oi->bso', xp[:, 1:-1], w[:, :, 1], precision=precision)
         + jnp.einsum('bsi,oi->bso', xp[:, 2:], w[:, :, 2], precision=precision)
         + b)
    return y


def reference(x_ids, emb_table, w1, b1, w2, b2, quantize=False):
    """Mirrors the PyTorch forward. quantize=True applies the kernel's bf16 MXU-input
    casts (accumulation stays f32) for a tight comparison."""
    p = lax.Precision.HIGHEST
    q = (lambda a: a.astype(jnp.bfloat16).astype(jnp.float32)) if quantize \
        else (lambda a: a.astype(jnp.float32))
    emb = q(emb_table)[x_ids]                                             # (B, S, 2H)
    h = jnp.maximum(_conv1d_same(q(emb), q(w1), b1.astype(jnp.float32), p), 0.0)
    h = jnp.maximum(_conv1d_same(q(h), q(w2), b2.astype(jnp.float32), p), 0.0)
    return jnp.sum(h, axis=0, keepdims=True)


if __name__ == "__main__":
    vocab, hidden = 16, 32
    batch, seq = 2, 8

    key = jax.random.PRNGKey(0)
    k_x, k_emb, k_w1, k_b1, k_w2, k_b2, k_x2 = jax.random.split(key, 7)

    x_ids = jax.random.randint(k_x, (batch, seq), 0, vocab, dtype=jnp.int32)
    emb_table = jax.random.normal(k_emb, (vocab, 2 * hidden), dtype=jnp.float32)
    w1 = 0.1 * jax.random.normal(k_w1, (hidden, 2 * hidden, 3), dtype=jnp.float32)
    b1 = 0.1 * jax.random.normal(k_b1, (hidden,), dtype=jnp.float32)
    w2 = 0.1 * jax.random.normal(k_w2, (hidden, hidden, 3), dtype=jnp.float32)
    b2 = 0.1 * jax.random.normal(k_b2, (hidden,), dtype=jnp.float32)

    # Config 1: spec shapes (batch=2, seq=8) — single grid step, tb=2 in-tile batch reduce.
    out = jax.block_until_ready(encoder_cnn(x_ids, emb_table, w1, b1, w2, b2))
    assert out.shape == (1, seq, hidden), out.shape
    ref_q = reference(x_ids, emb_table, w1, b1, w2, b2, quantize=True)
    assert jnp.allclose(out, ref_q, atol=2e-2, rtol=2e-2), \
        ("bf16-matched reference mismatch", float(jnp.max(jnp.abs(out - ref_q))))
    ref = reference(x_ids, emb_table, w1, b1, w2, b2, quantize=False)
    assert jnp.allclose(out, ref, atol=1.5e-1, rtol=1.5e-1), \
        ("f32 reference mismatch", float(jnp.max(jnp.abs(out - ref))))

    # Config 2: odd seq (exercises Sp padding), batch_tile=1 -> grid=(2, 2): exercises the
    # parallel shard axis and multi-step accumulator init/accumulate path.
    batch2, seq2 = 4, 6
    x_ids2 = jax.random.randint(k_x2, (batch2, seq2), 0, vocab, dtype=jnp.int32)
    out2 = jax.block_until_ready(
        encoder_cnn(x_ids2, emb_table, w1, b1, w2, b2, batch_tile=1))
    assert out2.shape == (1, seq2, hidden), out2.shape
    ref2_q = reference(x_ids2, emb_table, w1, b1, w2, b2, quantize=True)
    assert jnp.allclose(out2, ref2_q, atol=2e-2, rtol=2e-2), \
        ("bf16-matched reference mismatch (cfg2)", float(jnp.max(jnp.abs(out2 - ref2_q))))

    print("KERNEL_OK")
</pallas_src>

<mosaic_0001>
module attributes {stable_mosaic.version = 11 : i64} {
  func.func @encoder_cnn_kernel(%arg0: i32, %arg1: i32, %arg2: memref<16x1xi32, #tpu.memory_space<vmem>>, %arg3: memref<16x128xbf16, #tpu.memory_space<vmem>>, %arg4: memref<128x384xbf16, #tpu.memory_space<vmem>>, %arg5: memref<1x128xf32, #tpu.memory_space<vmem>>, %arg6: memref<128x384xbf16, #tpu.memory_space<vmem>>, %arg7: memref<1x128xf32, #tpu.memory_space<vmem>>, %arg8: memref<1x8x128xf32, #tpu.memory_space<vmem>>) attributes {dimension_semantics = [#tpu.dimension_semantics<parallel>, #tpu.dimension_semantics<arbitrary>], iteration_bounds = array<i64: 1, 1>, scalar_prefetch = 0 : i64, scratch_operands = 0 : i64, tpu.core_type = #tpu.core_type<tc>, window_params = [{transform_indices = @transform_0, window_bounds = array<i64: 16, 1>}, {pipeline_mode = #tpu.pipeline_mode<synchronous>, transform_indices = @transform_1, window_bounds = array<i64: 16, 128>}, {pipeline_mode = #tpu.pipeline_mode<synchronous>, transform_indices = @transform_2, window_bounds = array<i64: 128, 384>}, {pipeline_mode = #tpu.pipeline_mode<synchronous>, transform_indices = @transform_3, window_bounds = array<i64: 1, 128>}, {pipeline_mode = #tpu.pipeline_mode<synchronous>, transform_indices = @transform_4, window_bounds = array<i64: 128, 384>}, {pipeline_mode = #tpu.pipeline_mode<synchronous>, transform_indices = @transform_5, window_bounds = array<i64: 1, 128>}, {transform_indices = @transform_6, window_bounds = array<i64: 1, 8, 128>}]} {
    %0 = tpu.iota {dimensions = array<i32: 0>} : vector<16x1xi32>
    %c8_i32 = arith.constant 8 : i32
    %c0_i32 = arith.constant 0 : i32
    %1 = arith.cmpi eq, %c8_i32, %c0_i32 : i32
    %c1_i32 = arith.constant 1 : i32
    %2 = arith.select %1, %c1_i32, %c8_i32 : i32
    %3 = vector.broadcast %2 : i32 to vector<16x1xi32>
    %4 = arith.remsi %0, %3 : vector<16x1xi32>
    %c0_i32_0 = arith.constant 0 : i32
    %5 = vector.broadcast %c0_i32_0 : i32 to vector<16x1xi32>
    %6 = arith.cmpi ne, %4, %5 : vector<16x1xi32>
    %c0_i32_1 = arith.constant 0 : i32
    %7 = vector.broadcast %c0_i32_1 : i32 to vector<16x1xi32>
    %8 = arith.cmpi slt, %4, %7 : vector<16x1xi32>
    %c0_i32_2 = arith.constant 0 : i32
    %9 = arith.cmpi slt, %2, %c0_i32_2 : i32
    %10 = vector.broadcast %9 : i1 to vector<16x1xi1>
    %11 = vector.broadcast %10 : vector<16x1xi1> to vector<16x1xi1>
    %12 = arith.xori %8, %11 : vector<16x1xi1>
    %13 = arith.andi %12, %6 : vector<16x1xi1>
    %14 = vector.broadcast %2 : i32 to vector<16x1xi32>
    %15 = arith.addi %4, %14 : vector<16x1xi32>
    %16 = arith.select %13, %15, %4 : vector<16x1xi1>, vector<16x1xi32>
    %c0_i32_3 = arith.constant 0 : i32
    %17 = vector.broadcast %c0_i32_3 : i32 to vector<16x1xi32>
    %18 = arith.cmpi eq, %16, %17 : vector<16x1xi32>
    %c7_i32 = arith.constant 7 : i32
    %19 = vector.broadcast %c7_i32 : i32 to vector<16x1xi32>
    %20 = arith.cmpi eq, %16, %19 : vector<16x1xi32>
    %c0 = arith.constant 0 : index
    %c0_4 = arith.constant 0 : index
    %21 = vector.load %arg2[%c0, %c0_4] : memref<16x1xi32, #tpu.memory_space<vmem>>, vector<16x1xi32>
    %22 = tpu.iota {dimensions = array<i32: 1>} : vector<16x16xi32>
    %23 = vector.broadcast %21 : vector<16x1xi32> to vector<16x16xi32>
    %24 = arith.cmpi eq, %22, %23 : vector<16x16xi32>
    %25 = arith.extui %24 : vector<16x16xi1> to vector<16x16xi32>
    %26 = arith.sitofp %25 : vector<16x16xi32> to vector<16x16xf32>
    %27 = arith.truncf %26 : vector<16x16xf32> to vector<16x16xbf16>
    %c0_5 = arith.constant 0 : index
    %c0_6 = arith.constant 0 : index
    %28 = vector.load %arg3[%c0_5, %c0_6] : memref<16x128xbf16, #tpu.memory_space<vmem>>, vector<16x128xbf16>
    %cst = arith.constant dense<0.000000e+00> : vector<16x128xf32>
    %29 = tpu.matmul %27, %28, %cst {dimension_numbers = #tpu.dot_dimension_numbers<[1], [0], [0], [1], [0, 0, 1, 1], [], []>} : vector<16x16xbf16>, vector<16x128xbf16>, vector<16x128xf32> -> vector<16x128xf32>
    %30 = arith.truncf %29 : vector<16x128xf32> to vector<16x128xbf16>
    %c0_7 = arith.constant 0 : index
    %c0_8 = arith.constant 0 : index
    %31 = vector.load %arg4[%c0_7, %c0_8] : memref<128x384xbf16, #tpu.memory_space<vmem>>, vector<128x384xbf16>
    %cst_9 = arith.constant dense<0.000000e+00> : vector<16x384xf32>
    %32 = tpu.matmul %30, %31, %cst_9 {dimension_numbers = #tpu.dot_dimension_numbers<[1], [0], [0], [1], [0, 0, 1, 1], [], []>} : vector<16x128xbf16>, vector<128x384xbf16>, vector<16x384xf32> -> vector<16x384xf32>
    %33 = vector.extract_strided_slice %32 {offsets = [0, 0], sizes = [16, 128], strides = [1, 1]} : vector<16x384xf32> to vector<16x128xf32>
    %34 = vector.extract_strided_slice %32 {offsets = [0, 128], sizes = [16, 128], strides = [1, 1]} : vector<16x384xf32> to vector<16x128xf32>
    %35 = vector.extract_strided_slice %32 {offsets = [0, 256], sizes = [16, 128], strides = [1, 1]} : vector<16x384xf32> to vector<16x128xf32>
    %c1_i32_10 = arith.constant 1 : i32
    %36 = tpu.dynamic_rotate %33 by %c1_i32_10 dim 0 : vector<16x128xf32>, i32 -> vector<16x128xf32>
    %cst_11 = arith.constant 0.000000e+00 : f32
    %37 = vector.shape_cast %18 : vector<16x1xi1> to vector<16x1xi1>
    %38 = vector.broadcast %37 : vector<16x1xi1> to vector<16x128xi1>
    %39 = vector.broadcast %cst_11 : f32 to vector<16x128xf32>
    %40 = arith.select %38, %39, %36 : vector<16x128xi1>, vector<16x128xf32>
    %c15_i32 = arith.constant 15 : i32
    %41 = tpu.dynamic_rotate %35 by %c15_i32 dim 0 : vector<16x128xf32>, i32 -> vector<16x128xf32>
    %cst_12 = arith.constant 0.000000e+00 : f32
    %42 = vector.shape_cast %20 : vector<16x1xi1> to vector<16x1xi1>
    %43 = vector.broadcast %42 : vector<16x1xi1> to vector<16x128xi1>
    %44 = vector.broadcast %cst_12 : f32 to vector<16x128xf32>
    %45 = arith.select %43, %44, %41 : vector<16x128xi1>, vector<16x128xf32>
    %c0_13 = arith.constant 0 : index
    %c0_14 = arith.constant 0 : index
    %46 = vector.load %arg5[%c0_13, %c0_14] : memref<1x128xf32, #tpu.memory_space<vmem>>, vector<1x128xf32>
    %47 = vector.broadcast %46 : vector<1x128xf32> to vector<16x128xf32>
    %48 = arith.addf %34, %47 : vector<16x128xf32>
    %49 = arith.addf %48, %40 : vector<16x128xf32>
    %50 = arith.addf %49, %45 : vector<16x128xf32>
    %cst_15 = arith.constant 0.000000e+00 : f32
    %51 = vector.broadcast %cst_15 : f32 to vector<16x128xf32>
    %52 = arith.maximumf %50, %51 : vector<16x128xf32>
    %53 = arith.truncf %52 : vector<16x128xf32> to vector<16x128xbf16>
    %c0_16 = arith.constant 0 : index
    %c0_17 = arith.constant 0 : index
    %54 = vector.load %arg6[%c0_16, %c0_17] : memref<128x384xbf16, #tpu.memory_space<vmem>>, vector<128x384xbf16>
    %cst_18 = arith.constant dense<0.000000e+00> : vector<16x384xf32>
    %55 = tpu.matmul %53, %54, %cst_18 {dimension_numbers = #tpu.dot_dimension_numbers<[1], [0], [0], [1], [0, 0, 1, 1], [], []>} : vector<16x128xbf16>, vector<128x384xbf16>, vector<16x384xf32> -> vector<16x384xf32>
    %56 = vector.extract_strided_slice %55 {offsets = [0, 0], sizes = [16, 128], strides = [1, 1]} : vector<16x384xf32> to vector<16x128xf32>
    %57 = vector.extract_strided_slice %55 {offsets = [0, 128], sizes = [16, 128], strides = [1, 1]} : vector<16x384xf32> to vector<16x128xf32>
    %58 = vector.extract_strided_slice %55 {offsets = [0, 256], sizes = [16, 128], strides = [1, 1]} : vector<16x384xf32> to vector<16x128xf32>
    %c1_i32_19 = arith.constant 1 : i32
    %59 = tpu.dynamic_rotate %56 by %c1_i32_19 dim 0 : vector<16x128xf32>, i32 -> vector<16x128xf32>
    %cst_20 = arith.constant 0.000000e+00 : f32
    %60 = vector.shape_cast %18 : vector<16x1xi1> to vector<16x1xi1>
    %61 = vector.broadcast %60 : vector<16x1xi1> to vector<16x128xi1>
    %62 = vector.broadcast %cst_20 : f32 to vector<16x128xf32>
    %63 = arith.select %61, %62, %59 : vector<16x128xi1>, vector<16x128xf32>
    %c15_i32_21 = arith.constant 15 : i32
    %64 = tpu.dynamic_rotate %58 by %c15_i32_21 dim 0 : vector<16x128xf32>, i32 -> vector<16x128xf32>
    %cst_22 = arith.constant 0.000000e+00 : f32
    %65 = vector.shape_cast %20 : vector<16x1xi1> to vector<16x1xi1>
    %66 = vector.broadcast %65 : vector<16x1xi1> to vector<16x128xi1>
    %67 = vector.broadcast %cst_22 : f32 to vector<16x128xf32>
    %68 = arith.select %66, %67, %64 : vector<16x128xi1>, vector<16x128xf32>
    %c0_23 = arith.constant 0 : index
    %c0_24 = arith.constant 0 : index
    %69 = vector.load %arg7[%c0_23, %c0_24] : memref<1x128xf32, #tpu.memory_space<vmem>>, vector<1x128xf32>
    %70 = vector.broadcast %69 : vector<1x128xf32> to vector<16x128xf32>
    %71 = arith.addf %57, %70 : vector<16x128xf32>
    %72 = arith.addf %71, %63 : vector<16x128xf32>
    %73 = arith.addf %72, %68 : vector<16x128xf32>
    %cst_25 = arith.constant 0.000000e+00 : f32
    %74 = vector.broadcast %cst_25 : f32 to vector<16x128xf32>
    %75 = arith.maximumf %73, %74 : vector<16x128xf32>
    %76 = vector.shape_cast %75 : vector<16x128xf32> to vector<2x8x128xf32>
    %cst_26 = arith.constant dense<0.000000e+00> : vector<8x128xf32>
    %77 = vector.multi_reduction <add>, %76, %cst_26 [0] : vector<2x8x128xf32> to vector<8x128xf32>
    %c0_i32_27 = arith.constant 0 : i32
    %78 = arith.cmpi eq, %arg1, %c0_i32_27 : i32
    %79 = arith.extui %78 : i1 to i32
    %c0_i32_28 = arith.constant 0 : i32
    %80 = arith.cmpi ne, %79, %c0_i32_28 : i32
    scf.if %80 {
      %cst_35 = arith.constant 0.000000e+00 : f32
      %87 = vector.broadcast %cst_35 : f32 to vector<8x128xf32>
      %c0_36 = arith.constant 0 : index
      %c0_37 = arith.constant 0 : index
      %c0_38 = arith.constant 0 : index
      %88 = vector.load %arg8[%c0_36, %c0_37, %c0_38] : memref<1x8x128xf32, #tpu.memory_space<vmem>>, vector<1x8x128xf32>
      %89 = vector.shape_cast %88 : vector<1x8x128xf32> to vector<8x128xf32>
      %90 = vector.shape_cast %87 : vector<8x128xf32> to vector<1x8x128xf32>
      tpu.vector_store %arg8[%c0_36, %c0_37, %c0_38], %90 {strides = array<i32>} : memref<1x8x128xf32, #tpu.memory_space<vmem>>, vector<1x8x128xf32>,
    } else {
    }
    %c0_29 = arith.constant 0 : index
    %c0_30 = arith.constant 0 : index
    %c0_31 = arith.constant 0 : index
    %81 = vector.load %arg8[%c0_29, %c0_30, %c0_31] : memref<1x8x128xf32, #tpu.memory_space<vmem>>, vector<1x8x128xf32>
    %82 = vector.shape_cast %81 : vector<1x8x128xf32> to vector<8x128xf32>
    %83 = arith.addf %82, %77 : vector<8x128xf32>
    %c0_32 = arith.constant 0 : index
    %c0_33 = arith.constant 0 : index
    %c0_34 = arith.constant 0 : index
    %84 = vector.load %arg8[%c0_32, %c0_33, %c0_34] : memref<1x8x128xf32, #tpu.memory_space<vmem>>, vector<1x8x128xf32>
    %85 = vector.shape_cast %84 : vector<1x8x128xf32> to vector<8x128xf32>
    %86 = vector.shape_cast %83 : vector<8x128xf32> to vector<1x8x128xf32>
    tpu.vector_store %arg8[%c0_32, %c0_33, %c0_34], %86 {strides = array<i32>} : memref<1x8x128xf32, #tpu.memory_space<vmem>>, vector<1x8x128xf32>,
    return
  }
  func.func @transform_0(%arg0: i32, %arg1: i32) -> (i32, i32) {
    %c1_i32 = arith.constant 1 : i32
    %0 = arith.muli %arg0, %c1_i32 : i32
    %1 = arith.addi %0, %arg1 : i32
    %c0_i32 = arith.constant 0 : i32
    %c0_i32_0 = arith.constant 0 : i32
    return %1, %c0_i32 : i32, i32
  }
  func.func @transform_1(%arg0: i32, %arg1: i32) -> (i32, i32) {
    %c0_i32 = arith.constant 0 : i32
    %c0_i32_0 = arith.constant 0 : i32
    %c0_i32_1 = arith.constant 0 : i32
    return %c0_i32, %c0_i32_0 : i32, i32
  }
  func.func @transform_2(%arg0: i32, %arg1: i32) -> (i32, i32) {
    %c0_i32 = arith.constant 0 : i32
    %c0_i32_0 = arith.constant 0 : i32
    %c0_i32_1 = arith.constant 0 : i32
    return %c0_i32, %c0_i32_0 : i32, i32
  }
  func.func @transform_3(%arg0: i32, %arg1: i32) -> (i32, i32) {
    %c0_i32 = arith.constant 0 : i32
    %c0_i32_0 = arith.constant 0 : i32
    %c0_i32_1 = arith.constant 0 : i32
    return %c0_i32, %c0_i32_0 : i32, i32
  }
  func.func @transform_4(%arg0: i32, %arg1: i32) -> (i32, i32) {
    %c0_i32 = arith.constant 0 : i32
    %c0_i32_0 = arith.constant 0 : i32
    %c0_i32_1 = arith.constant 0 : i32
    return %c0_i32, %c0_i32_0 : i32, i32
  }
  func.func @transform_5(%arg0: i32, %arg1: i32) -> (i32, i32) {
    %c0_i32 = arith.constant 0 : i32
    %c0_i32_0 = arith.constant 0 : i32
    %c0_i32_1 = arith.constant 0 : i32
    return %c0_i32, %c0_i32_0 : i32, i32
  }
  func.func @transform_6(%arg0: i32, %arg1: i32) -> (i32, i32, i32) {
    %c0_i32 = arith.constant 0 : i32
    %c0_i32_0 = arith.constant 0 : i32
    %c0_i32_1 = arith.constant 0 : i32
    return %arg0, %c0_i32, %c0_i32_0 : i32, i32, i32
  }
}

</mosaic_0001>

<llo_original>
// kernel: tpu_custom_call.1
$region0: #{tpu_custom_call.1}
  #allocation0 [shape = 'u32[]', space=smem, size = 0x4, offset = 0x4, fixed_abs, tag = 'smem constant byte address 0x4 - core index']
  #allocation1 [shape = 'u32[144,128]{1,0:T(1,128)}', space=vmem, size = 0x12000, scoped, tag = 'internal scratch']
  %s0 = inlined_call_operand.vmem [shape: s32[16,1], index: 0, kind: input, shape index: {}]
  %s1 = inlined_call_operand.vmem [shape: bf16[16,128], index: 1, kind: input, shape index: {}]
  %s2 = inlined_call_operand.hbm [shape: bf16[128,384], index: 2, kind: input, shape index: {}]
  %s3 = inlined_call_operand.vmem [shape: f32[1,128], index: 3, kind: input, shape index: {}]
  %s4 = inlined_call_operand.hbm [shape: bf16[128,384], index: 4, kind: input, shape index: {}]
  %s5 = inlined_call_operand.vmem [shape: f32[1,128], index: 5, kind: input, shape index: {}]
  %s6 = inlined_call_operand.hbm [shape: f32[1,8,128], index: 6, kind: output, shape index: {}]
  %s7 = sld [smem:[#allocation0]]
  $region46: #{tpu_custom_call.1} parent=0
    _
  %s9 = ssub.s32 1, %s7
  %s10 = scalar_select 0, %s9, %s7
  $region1: #{tpu_custom_call.1} parent=0
    #allocation2 [shape = 'u8[98304]{0}', space=vmem, size = 0x18000, scoped, tag = 'input window, operand 2, single buffered']
    #allocation3 [shape = 's32[1]{0}', space=sflag, size = 0x4, scoped, tag = 'scoped memory for tpu_custom_call.1']
    #allocation4 [shape = 's32[1]{0}', space=sflag, size = 0x4, scoped, tag = 'scoped memory for tpu_custom_call.1']
    #allocation5 [shape = 'u8[98304]{0}', space=vmem, size = 0x18000, scoped, tag = 'input window, operand 4, single buffered']
    #allocation6 [shape = 's32[1]{0}', space=sflag, size = 0x4, scoped, tag = 'scoped memory for tpu_custom_call.1']
    #allocation7 [shape = 'u8[4096]{0}', space=vmem, size = 0x1000, scoped, tag = 'output window, operand 0, single buffered']
    %11 = vsyncpa [#allocation3], 0
    %12 = vsyncpa [#allocation6], 0
    %13 = vsyncpa [#allocation4], 0
    // Predicated region
    $region2: #{tpu_custom_call.1} parent=1 // pred_check
      _
    $region3: #{tpu_custom_call.1} parent=1 // pred_check_branch
      %15 = sbr.rel (0) target = $region5
    $region4: #{tpu_custom_call.1} parent=1 // pred_region
      %s16 = sadd.s32 0, 0
      %s17 = smul.u32 2, %s16
      %p18 = scmp.lt.s32.totalorder %s17, 1
      %s19 = scalar_select %p18, %s17, 1
      %s20 = smul.addr %s19, 8
      %s21 = scalar_lea.vmem %s0, %s20
      %s22 = sadd.s32 0, 0
      %s23 = smul.u32 2, %s22
    $region5: #{tpu_custom_call.1} parent=1 // pred_fallthru
      _
    // Predicated region
    $region6: #{tpu_custom_call.1} parent=1 // pred_check
      _
    $region7: #{tpu_custom_call.1} parent=1 // pred_check_branch
      %25 = sbr.rel (0) target = $region9
    $region8: #{tpu_custom_call.1} parent=1 // pred_region
      _
    $region9: #{tpu_custom_call.1} parent=1 // pred_fallthru
      _
    // Predicated region
    $region10: #{tpu_custom_call.1} parent=1 // pred_check
      _
    $region11: #{tpu_custom_call.1} parent=1 // pred_check_branch
      %27 = sbr.rel (0) target = $region13
    $region12: #{tpu_custom_call.1} parent=1 // pred_region
      %s29 = ssub.s32 3072, 3072
      %30 = vsyncadd [#allocation3], %s29
      %s31 = sshll.u32 [#allocation2], 4
      %s32 = int_to_ptr.vmem [resolvable:$true] %s31
      %37 = dma.hbm_to_vmem [thread:$0]  %s2, 3072, %s32, [#allocation3], 192, 192, 12
    $region13: #{tpu_custom_call.1} parent=1 // pred_fallthru
      _
    // Predicated region
    $region14: #{tpu_custom_call.1} parent=1 // pred_check
      _
    $region15: #{tpu_custom_call.1} parent=1 // pred_check_branch
      %39 = sbr.rel (0) target = $region17
    $region16: #{tpu_custom_call.1} parent=1 // pred_region
      _
    $region17: #{tpu_custom_call.1} parent=1 // pred_fallthru
      _
    // Predicated region
    $region18: #{tpu_custom_call.1} parent=1 // pred_check
      _
    $region19: #{tpu_custom_call.1} parent=1 // pred_check_branch
      %41 = sbr.rel (0) target = $region21
    $region20: #{tpu_custom_call.1} parent=1 // pred_region
      %s43 = ssub.s32 3072, 3072
      %44 = vsyncadd [#allocation6], %s43
      %s45 = sshll.u32 [#allocation5], 4
      %s46 = int_to_ptr.vmem [resolvable:$true] %s45
      %51 = dma.hbm_to_vmem [thread:$0]  %s4, 3072, %s46, [#allocation6], 192, 192, 12
    $region21: #{tpu_custom_call.1} parent=1 // pred_fallthru
      _
    // Predicated region
    $region22: #{tpu_custom_call.1} parent=1 // pred_check
      _
    $region23: #{tpu_custom_call.1} parent=1 // pred_check_branch
      %53 = sbr.rel (0) target = $region25
    $region24: #{tpu_custom_call.1} parent=1 // pred_region
      _
    $region25: #{tpu_custom_call.1} parent=1 // pred_fallthru
      _
    // Predicated region
    $region26: #{tpu_custom_call.1} parent=1 // pred_check
      _
    $region27: #{tpu_custom_call.1} parent=1 // pred_check_branch
      %55 = sbr.rel (0) target = $region29
    $region28: #{tpu_custom_call.1} parent=1 // pred_region
      %56 = dma.done [#allocation3], 3072
    $region29: #{tpu_custom_call.1} parent=1 // pred_fallthru
      _
    // Predicated region
    $region30: #{tpu_custom_call.1} parent=1 // pred_check
      _
    $region31: #{tpu_custom_call.1} parent=1 // pred_check_branch
      %58 = sbr.rel (0) target = $region33
    $region32: #{tpu_custom_call.1} parent=1 // pred_region
      %59 = dma.done [#allocation6], 3072
    $region33: #{tpu_custom_call.1} parent=1 // pred_fallthru
      _
    %s60 = sadd.s32 0, 0
    %s61 = smul.u32 2, %s60
    %p62 = scmp.lt.s32.totalorder %s61, 1
    %s63 = scalar_select %p62, %s61, 1
    %s64 = smul.addr %s63, 8
    %s65 = scalar_lea.vmem %s0, %s64
    %s66 = sadd.s32 0, 0
    %s67 = smul.u32 2, %s66
    %p68 = scmp.lt.s32.totalorder %s67, 1
    %s69 = scalar_select %p68, %s67, 1
    %s70 = smul.addr %s69, 8
    %s71 = scalar_lea.vmem %s0, %s70
    %s72 = sadd.s32 0, 0
    %s73 = smul.u32 2, %s72
    %v75 = vlaneseq
    %v76 = vshrl.u32 %v75, 7
    %v77 = vadd.s32 %v76, 8
    %vm78 = vcmp.lt.s32.totalorder %v76, 0
    %v79 = vsub.s32 0, %v76
    %v80 = vsel %vm78, %v79, %v76
    %v81 = vshrl.u32 %v80, 3
    %v82 = vand.u32 %v80, 7
    %v83 = vsub.s32 0, %v82
    %v84 = vsel %vm78, %v83, %v82
    %vm85 = vcmp.lt.s32.totalorder %v77, 0
    %v86 = vsub.s32 0, %v77
    %v87 = vsel %vm85, %v86, %v77
    %v88 = vshrl.u32 %v87, 3
    %v89 = vand.u32 %v87, 7
    %v90 = vsub.s32 0, %v89
    %v91 = vsel %vm85, %v90, %v89
    %vm92 = vcmp.ne.s32.totalorder %v84, 0
    %vm93 = vcmp.ne.s32.totalorder %v91, 0
    %vm94 = vcmp.lt.s32.totalorder %v84, 0
    %vm95 = vcmp.lt.s32.totalorder %v91, 0
    %vm96 = vmand %vm94, %vm92
    %vm97 = vmand %vm95, %vm93
    %v98 = vadd.s32 %v84, 8
    %v99 = vadd.s32 %v91, 8
    %v100 = vsel %vm96, %v98, %v84
    %v101 = vsel %vm97, %v99, %v91
    %vm102 = vcmp.eq.s32.totalorder %v100, 0
    %vm103 = vcmp.eq.s32.totalorder %v101, 0
    %vm104 = vcmp.eq.s32.totalorder %v100, 7
    %vm105 = vcmp.eq.s32.totalorder %v101, 7
    %v106 = vld [vmem:[%s71] sm:$0xff]
    %v107 = vld [vmem:[%s71 + $0x8] sm:$0xff]
    %v108 = vlaneseq
    %v109 = vand.u32 %v108, 127
    %110 = vset.pattern.permute.xlu0 0
    %111 = vperm.xlu0 %110, %v106
    %v112 = vpop.permute.xlu0 %111
    %113 = vset.pattern.permute.xlu0 0
    %114 = vperm.xlu0 %113, %v107
    %v115 = vpop.permute.xlu0 %114
    %vm116 = vcmp.eq.s32.totalorder %v109, %v112
    %vm117 = vcmp.eq.s32.totalorder %v109, %v115
    %v118 = vsel %vm116, 1, 0
    %v119 = vsel %vm117, 1, 0
    %v120 = vcvt.s32.f32 %v118
    %v121 = vcvt.s32.f32 %v119
    %v122 = vpack.c.bf16 %v121, %v120
    %v123 = vld [vmem:[%s1] sm:$0xf]
    %v124 = vld [vmem:[%s1 + $0x4] sm:$0xf]
    %v127 = vunpack.c.l.b16 %v123
    %v128 = vunpack.c.l.b16 %v124
    %v129 = vpack.c.b16 %v128, %v127
    %vm131 = vcmask 130048
    %v133 = vsel %vm131, %v122, 0
    %135 = vmatprep.subr.bf16.mxu0 0
    %136 = vmatpush1.bf16.msra.mxu0 %v129
    %137 = vmatprep.subr.bf16.mxu0 0
    %138 = vmatpush1.bf16.msra.mxu0 0
    %139 = vmatprep.subr.bf16.mxu0 0
    %140 = vmatpush1.bf16.msra.mxu0 0
    %141 = vmatprep.subr.bf16.mxu0 0
    %142 = vmatpush1.bf16.msra.mxu0 0
    %143 = vmatprep.subr.bf16.mxu0 0
    %144 = vmatpush1.bf16.msra.mxu0 0
    %145 = vmatprep.subr.bf16.mxu0 0
    %146 = vmatpush1.bf16.msra.mxu0 0
    %147 = vmatprep.subr.bf16.mxu0 0
    %148 = vmatpush1.bf16.msra.mxu0 0
    %149 = vmatprep.subr.bf16.mxu0 0
    %150 = vmatpush1.bf16.msra.mxu0 0
    %151 = vmatprep.subr.bf16.mxu0 0
    %152 = vmatpush1.bf16.msra.mxu0 0
    %153 = vmatprep.subr.bf16.mxu0 0
    %154 = vmatpush1.bf16.msra.mxu0 0
    %155 = vmatprep.subr.bf16.mxu0 0
    %156 = vmatpush1.bf16.msra.mxu0 0
    %157 = vmatprep.subr.bf16.mxu0 0
    %158 = vmatpush1.bf16.msra.mxu0 0
    %159 = vmatprep.subr.bf16.mxu0 0
    %160 = vmatpush1.bf16.msra.mxu0 0
    %161 = vmatprep.subr.bf16.mxu0 0
    %162 = vmatpush1.bf16.msra.mxu0 0
    %163 = vmatprep.subr.bf16.mxu0 0
    %164 = vmatpush1.bf16.msra.mxu0 0
    %165 = vmatprep.subr.bf16.mxu0 0
    %166 = vmatpush1.bf16.msra.mxu0 0
    %167 = vmatprep.mubr.bf16.mxu0 0
    %168 = vmatmul.mubr.bf16.gmra.mrb[0].mxu0 %v133
    %v169 = vpop.f32.mrb[0].mxu0
    %v170 = vadd.f32 0.0, %v169
    %v171 = vpop.f32.mrb[0].mxu0
    %v172 = vpop.f32.mrb[0].mxu0
    %v173 = vadd.f32 0.0, %v172
    %v174 = vpop.f32.mrb[0].mxu0
    %175 = vdwg.mxu0
    %v176 = vpack.c.bf16 %v173, %v170
    %v177 = vld [vmem:[#allocation2] sm:$0xff]
    %v178 = vld [vmem:[#allocation2 + $0x8] sm:$0xf]
    %v179 = vld [vmem:[#allocation2 + $0xc] sm:$0xff]
    %v180 = vld [vmem:[#allocation2 + $0x14] sm:$0xf]
    %v181 = vld [vmem:[#allocation2 + $0x18] sm:$0xff]
    %v182 = vld [vmem:[#allocation2 + $0x20] sm:$0xf]
    %v183 = vld [vmem:[#allocation2 + $0x24] sm:$0xff]
    %v184 = vld [vmem:[#allocation2 + $0x2c] sm:$0xf]
    %v185 = vld [vmem:[#allocation2 + $0x30] sm:$0xff]
    %v186 = vld [vmem:[#allocation2 + $0x38] sm:$0xf]
    %v187 = vld [vmem:[#allocation2 + $0x3c] sm:$0xff]
    %v188 = vld [vmem:[#allocation2 + $0x44] sm:$0xf]
    %v189 = vld [vmem:[#allocation2 + $0x48] sm:$0xff]
    %v190 = vld [vmem:[#allocation2 + $0x50] sm:$0xf]
    %v191 = vld [vmem:[#allocation2 + $0x54] sm:$0xff]
    %v192 = vld [vmem:[#allocation2 + $0x5c] sm:$0xf]
    %v193 = vld [vmem:[#allocation2 + $0x60] sm:$0xff]
    %v194 = vld [vmem:[#allocation2 + $0x68] sm:$0xf]
    %v195 = vld [vmem:[#allocation2 + $0x6c] sm:$0xff]
    %v196 = vld [vmem:[#allocation2 + $0x74] sm:$0xf]
    %v197 = vld [vmem:[#allocation2 + $0x78] sm:$0xff]
    %v198 = vld [vmem:[#allocation2 + $0x80] sm:$0xf]
    %v199 = vld [vmem:[#allocation2 + $0x84] sm:$0xff]
    %v200 = vld [vmem:[#allocation2 + $0x8c] sm:$0xf]
    %v201 = vld [vmem:[#allocation2 + $0x90] sm:$0xff]
    %v202 = vld [vmem:[#allocation2 + $0x98] sm:$0xf]
    %v203 = vld [vmem:[#allocation2 + $0x9c] sm:$0xff]
    %v204 = vld [vmem:[#allocation2 + $0xa4] sm:$0xf]
    %v205 = vld [vmem:[#allocation2 + $0xa8] sm:$0xff]
    %v206 = vld [vmem:[#allocation2 + $0xb0] sm:$0xf]
    %v207 = vld [vmem:[#allocation2 + $0xb4] sm:$0xff]
    %v208 = vld [vmem:[#allocation2 + $0xbc] sm:$0xf]
    %v241 = vunpack.c.l.b16 %v177
    %v242 = vunpack.c.h.b16 %v177
    %v243 = vunpack.c.l.b16 %v178
    %v244 = vunpack.c.l.b16 %v179
    %v245 = vunpack.c.h.b16 %v179
    %v246 = vunpack.c.l.b16 %v180
    %v247 = vunpack.c.l.b16 %v181
    %v248 = vunpack.c.h.b16 %v181
    %v249 = vunpack.c.l.b16 %v182
    %v250 = vunpack.c.l.b16 %v183
    %v251 = vunpack.c.h.b16 %v183
    %v252 = vunpack.c.l.b16 %v184
    %v253 = vunpack.c.l.b16 %v185
    %v254 = vunpack.c.h.b16 %v185
    %v255 = vunpack.c.l.b16 %v186
    %v256 = vunpack.c.l.b16 %v187
    %v257 = vunpack.c.h.b16 %v187
    %v258 = vunpack.c.l.b16 %v188
    %v259 = vunpack.c.l.b16 %v189
    %v260 = vunpack.c.h.b16 %v189
    %v261 = vunpack.c.l.b16 %v190
    %v262 = vunpack.c.l.b16 %v191
    %v263 = vunpack.c.h.b16 %v191
    %v264 = vunpack.c.l.b16 %v192
    %v265 = vunpack.c.l.b16 %v193
    %v266 = vunpack.c.h.b16 %v193
    %v267 = vunpack.c.l.b16 %v194
    %v268 = vunpack.c.l.b16 %v195
    %v269 = vunpack.c.h.b16 %v195
    %v270 = vunpack.c.l.b16 %v196
    %v271 = vunpack.c.l.b16 %v197
    %v272 = vunpack.c.h.b16 %v197
    %v273 = vunpack.c.l.b16 %v198
    %v274 = vunpack.c.l.b16 %v199
    %v275 = vunpack.c.h.b16 %v199
    %v276 = vunpack.c.l.b16 %v200
    %v277 = vunpack.c.l.b16 %v201
    %v278 = vunpack.c.h.b16 %v201
    %v279 = vunpack.c.l.b16 %v202
    %v280 = vunpack.c.l.b16 %v203
    %v281 = vunpack.c.h.b16 %v203
    %v282 = vunpack.c.l.b16 %v204
    %v283 = vunpack.c.l.b16 %v205
    %v284 = vunpack.c.h.b16 %v205
    %v285 = vunpack.c.l.b16 %v206
    %v286 = vunpack.c.l.b16 %v207
    %v287 = vunpack.c.h.b16 %v207
    %v288 = vunpack.c.l.b16 %v208
    %v289 = vpack.c.b16 %v244, %v241
    %v290 = vpack.c.b16 %v245, %v242
    %v291 = vpack.c.b16 %v246, %v243
    %v292 = vpack.c.b16 %v250, %v247
    %v293 = vpack.c.b16 %v251, %v248
    %v294 = vpack.c.b16 %v252, %v249
    %v295 = vpack.c.b16 %v256, %v253
    %v296 = vpack.c.b16 %v257, %v254
    %v297 = vpack.c.b16 %v258, %v255
    %v298 = vpack.c.b16 %v262, %v259
    %v299 = vpack.c.b16 %v263, %v260
    %v300 = vpack.c.b16 %v264, %v261
    %v301 = vpack.c.b16 %v268, %v265
    %v302 = vpack.c.b16 %v269, %v266
    %v303 = vpack.c.b16 %v270, %v267
    %v304 = vpack.c.b16 %v274, %v271
    %v305 = vpack.c.b16 %v275, %v272
    %v306 = vpack.c.b16 %v276, %v273
    %v307 = vpack.c.b16 %v280, %v277
    %v308 = vpack.c.b16 %v281, %v278
    %v309 = vpack.c.b16 %v282, %v279
    %v310 = vpack.c.b16 %v286, %v283
    %v311 = vpack.c.b16 %v287, %v284
    %v312 = vpack.c.b16 %v288, %v285
    %337 = vmatprep.subr.bf16.mxu0 %v290
    %338 = vmatpush1.bf16.msra.mxu0 %v289
    %339 = vmatprep.subr.bf16.mxu0 %v293
    %340 = vmatpush1.bf16.msra.mxu0 %v292
    %341 = vmatprep.subr.bf16.mxu0 %v296
    %342 = vmatpush1.bf16.msra.mxu0 %v295
    %343 = vmatprep.subr.bf16.mxu0 %v299
    %344 = vmatpush1.bf16.msra.mxu0 %v298
    %345 = vmatprep.subr.bf16.mxu0 %v302
    %346 = vmatpush1.bf16.msra.mxu0 %v301
    %347 = vmatprep.subr.bf16.mxu0 %v305
    %348 = vmatpush1.bf16.msra.mxu0 %v304
    %349 = vmatprep.subr.bf16.mxu0 %v308
    %350 = vmatpush1.bf16.msra.mxu0 %v307
    %351 = vmatprep.subr.bf16.mxu0 %v311
    %352 = vmatpush1.bf16.msra.mxu0 %v310
    %353 = vmatprep.subr.bf16.mxu0 0
    %354 = vmatpush1.bf16.msra.mxu0 0
    %355 = vmatprep.subr.bf16.mxu0 0
    %356 = vmatpush1.bf16.msra.mxu0 0
    %357 = vmatprep.subr.bf16.mxu0 0
    %358 = vmatpush1.bf16.msra.mxu0 0
    %359 = vmatprep.subr.bf16.mxu0 0
    %360 = vmatpush1.bf16.msra.mxu0 0
    %361 = vmatprep.subr.bf16.mxu0 0
    %362 = vmatpush1.bf16.msra.mxu0 0
    %363 = vmatprep.subr.bf16.mxu0 0
    %364 = vmatpush1.bf16.msra.mxu0 0
    %365 = vmatprep.subr.bf16.mxu0 0
    %366 = vmatpush1.bf16.msra.mxu0 0
    %367 = vmatprep.subr.bf16.mxu0 0
    %368 = vmatpush1.bf16.msra.mxu0 0
    %369 = vmatprep.mubr.bf16.mxu0 0
    %370 = vmatmul.mubr.bf16.gmra.mrb[0].mxu0 %v176
    %v371 = vpop.f32.mrb[0].mxu0
    %v372 = vadd.f32 0.0, %v371
    %v373 = vpop.f32.mrb[0].mxu0
    %v374 = vadd.f32 0.0, %v373
    %v375 = vpop.f32.mrb[0].mxu0
    %v376 = vadd.f32 0.0, %v375
    %v377 = vpop.f32.mrb[0].mxu0
    %v378 = vadd.f32 0.0, %v377
    %379 = vdwg.mxu0
    %380 = vmatprep.subr.bf16.mxu0 0
    %381 = vmatpush1.bf16.msra.mxu0 %v291
    %382 = vmatprep.subr.bf16.mxu0 0
    %383 = vmatpush1.bf16.msra.mxu0 %v294
    %384 = vmatprep.subr.bf16.mxu0 0
    %385 = vmatpush1.bf16.msra.mxu0 %v297
    %386 = vmatprep.subr.bf16.mxu0 0
    %387 = vmatpush1.bf16.msra.mxu0 %v300
    %388 = vmatprep.subr.bf16.mxu0 0
    %389 = vmatpush1.bf16.msra.mxu0 %v303
    %390 = vmatprep.subr.bf16.mxu0 0
    %391 = vmatpush1.bf16.msra.mxu0 %v306
    %392 = vmatprep.subr.bf16.mxu0 0
    %393 = vmatpush1.bf16.msra.mxu0 %v309
    %394 = vmatprep.subr.bf16.mxu0 0
    %395 = vmatpush1.bf16.msra.mxu0 %v312
    %396 = vmatprep.subr.bf16.mxu0 0
    %397 = vmatpush1.bf16.msra.mxu0 0
    %398 = vmatprep.subr.bf16.mxu0 0
    %399 = vmatpush1.bf16.msra.mxu0 0
    %400 = vmatprep.subr.bf16.mxu0 0
    %401 = vmatpush1.bf16.msra.mxu0 0
    %402 = vmatprep.subr.bf16.mxu0 0
    %403 = vmatpush1.bf16.msra.mxu0 0
    %404 = vmatprep.subr.bf16.mxu0 0
    %405 = vmatpush1.bf16.msra.mxu0 0
    %406 = vmatprep.subr.bf16.mxu0 0
    %407 = vmatpush1.bf16.msra.mxu0 0
    %408 = vmatprep.subr.bf16.mxu0 0
    %409 = vmatpush1.bf16.msra.mxu0 0
    %410 = vmatprep.subr.bf16.mxu0 0
    %411 = vmatpush1.bf16.msra.mxu0 0
    %412 = vmatprep.mubr.bf16.mxu0 0
    %413 = vmatmul.mubr.bf16.gmra.mrb[0].mxu0 %v176
    %v414 = vpop.f32.mrb[0].mxu0
    %v415 = vadd.f32 0.0, %v414
    %v416 = vpop.f32.mrb[0].mxu0
    %v417 = vpop.f32.mrb[0].mxu0
    %v418 = vadd.f32 0.0, %v417
    %v419 = vpop.f32.mrb[0].mxu0
    %420 = vdwg.mxu0
    %v421 = vrot.slane %v372, 7
    %v422 = vrot.slane %v376, 7
    %vm423 = vcmp.lt.s32.totalorder %v76, 1
    %v424 = vsel %vm423, %v421, %v422
    %v425 = vsel %vm423, %v422, %v421
    %v426 = vsel %vm102, 1, 0
    %v427 = vsel %vm103, 1, 0
    %vm428 = vcmp.eq.s32.totalorder %v426, 1
    %vm429 = vcmp.eq.s32.totalorder %v427, 1
    %v430 = vsel %vm428, 0.0, %v425
    %v431 = vsel %vm429, 0.0, %v424
    %v432 = vrot.slane %v415, 1
    %v433 = vrot.slane %v418, 1
    %vm434 = vcmp.lt.s32.totalorder %v76, 7
    %v435 = vsel %vm434, %v432, %v433
    %v436 = vsel %vm434, %v433, %v432
    %v437 = vsel %vm104, 1, 0
    %v438 = vsel %vm105, 1, 0
    %vm439 = vcmp.eq.s32.totalorder %v437, 1
    %vm440 = vcmp.eq.s32.totalorder %v438, 1
    %v441 = vsel %vm439, 0.0, %v435
    %v442 = vsel %vm440, 0.0, %v436
    %v443 = vld [vmem:[%s3] sm:$0x1]
    %v445 = vlaneseq
    %v446 = vshrl.u32 %v445, 7
    %v447 = vsub.s32 0, %v446
    %v448 = vrot.slane %v443, %v447
    %v450 = vadd.f32 %v374, %v448
    %v451 = vadd.f32 %v378, %v448
    %v452 = vadd.f32 %v450, %v430
    %v453 = vadd.f32 %v451, %v431
    %v454 = vadd.f32 %v452, %v441
    %v455 = vadd.f32 %v453, %v442
    %v456 = vmax.f32 %v454, 0.0
    %v457 = vmax.f32 %v455, 0.0
    %v458 = vpack.c.bf16 %v457, %v456
    %v459 = vld [vmem:[#allocation5] sm:$0xff]
    %v460 = vld [vmem:[#allocation5 + $0x8] sm:$0xf]
    %v461 = vld [vmem:[#allocation5 + $0xc] sm:$0xff]
    %v462 = vld [vmem:[#allocation5 + $0x14] sm:$0xf]
    %v463 = vld [vmem:[#allocation5 + $0x18] sm:$0xff]
    %v464 = vld [vmem:[#allocation5 + $0x20] sm:$0xf]
    %v465 = vld [vmem:[#allocation5 + $0x24] sm:$0xff]
    %v466 = vld [vmem:[#allocation5 + $0x2c] sm:$0xf]
    %v467 = vld [vmem:[#allocation5 + $0x30] sm:$0xff]
    %v468 = vld [vmem:[#allocation5 + $0x38] sm:$0xf]
    %v469 = vld [vmem:[#allocation5 + $0x3c] sm:$0xff]
    %v470 = vld [vmem:[#allocation5 + $0x44] sm:$0xf]
    %v471 = vld [vmem:[#allocation5 + $0x48] sm:$0xff]
    %v472 = vld [vmem:[#allocation5 + $0x50] sm:$0xf]
    %v473 = vld [vmem:[#allocation5 + $0x54] sm:$0xff]
    %v474 = vld [vmem:[#allocation5 + $0x5c] sm:$0xf]
    %v475 = vld [vmem:[#allocation5 + $0x60] sm:$0xff]
    %v476 = vld [vmem:[#allocation5 + $0x68] sm:$0xf]
    %v477 = vld [vmem:[#allocation5 + $0x6c] sm:$0xff]
    %v478 = vld [vmem:[#allocation5 + $0x74] sm:$0xf]
    %v479 = vld [vmem:[#allocation5 + $0x78] sm:$0xff]
    %v480 = vld [vmem:[#allocation5 + $0x80] sm:$0xf]
    %v481 = vld [vmem:[#allocation5 + $0x84] sm:$0xff]
    %v482 = vld [vmem:[#allocation5 + $0x8c] sm:$0xf]
    %v483 = vld [vmem:[#allocation5 + $0x90] sm:$0xff]
    %v484 = vld [vmem:[#allocation5 + $0x98] sm:$0xf]
    %v485 = vld [vmem:[#allocation5 + $0x9c] sm:$0xff]
    %v486 = vld [vmem:[#allocation5 + $0xa4] sm:$0xf]
    %v487 = vld [vmem:[#allocation5 + $0xa8] sm:$0xff]
    %v488 = vld [vmem:[#allocation5 + $0xb0] sm:$0xf]
    %v489 = vld [vmem:[#allocation5 + $0xb4] sm:$0xff]
    %v490 = vld [vmem:[#allocation5 + $0xbc] sm:$0xf]
    %v523 = vunpack.c.l.b16 %v459
    %v524 = vunpack.c.h.b16 %v459
    %v525 = vunpack.c.l.b16 %v460
    %v526 = vunpack.c.l.b16 %v461
    %v527 = vunpack.c.h.b16 %v461
    %v528 = vunpack.c.l.b16 %v462
    %v529 = vunpack.c.l.b16 %v463
    %v530 = vunpack.c.h.b16 %v463
    %v531 = vunpack.c.l.b16 %v464
    %v532 = vunpack.c.l.b16 %v465
    %v533 = vunpack.c.h.b16 %v465
    %v534 = vunpack.c.l.b16 %v466
    %v535 = vunpack.c.l.b16 %v467
    %v536 = vunpack.c.h.b16 %v467
    %v537 = vunpack.c.l.b16 %v468
    %v538 = vunpack.c.l.b16 %v469
    %v539 = vunpack.c.h.b16 %v469
    %v540 = vunpack.c.l.b16 %v470
    %v541 = vunpack.c.l.b16 %v471
    %v542 = vunpack.c.h.b16 %v471
    %v543 = vunpack.c.l.b16 %v472
    %v544 = vunpack.c.l.b16 %v473
    %v545 = vunpack.c.h.b16 %v473
    %v546 = vunpack.c.l.b16 %v474
    %v547 = vunpack.c.l.b16 %v475
    %v548 = vunpack.c.h.b16 %v475
    %v549 = vunpack.c.l.b16 %v476
    %v550 = vunpack.c.l.b16 %v477
    %v551 = vunpack.c.h.b16 %v477
    %v552 = vunpack.c.l.b16 %v478
    %v553 = vunpack.c.l.b16 %v479
    %v554 = vunpack.c.h.b16 %v479
    %v555 = vunpack.c.l.b16 %v480
    %v556 = vunpack.c.l.b16 %v481
    %v557 = vunpack.c.h.b16 %v481
    %v558 = vunpack.c.l.b16 %v482
    %v559 = vunpack.c.l.b16 %v483
    %v560 = vunpack.c.h.b16 %v483
    %v561 = vunpack.c.l.b16 %v484
    %v562 = vunpack.c.l.b16 %v485
    %v563 = vunpack.c.h.b16 %v485
    %v564 = vunpack.c.l.b16 %v486
    %v565 = vunpack.c.l.b16 %v487
    %v566 = vunpack.c.h.b16 %v487
    %v567 = vunpack.c.l.b16 %v488
    %v568 = vunpack.c.l.b16 %v489
    %v569 = vunpack.c.h.b16 %v489
    %v570 = vunpack.c.l.b16 %v490
    %v571 = vpack.c.b16 %v526, %v523
    %v572 = vpack.c.b16 %v527, %v524
    %v573 = vpack.c.b16 %v528, %v525
    %v574 = vpack.c.b16 %v532, %v529
    %v575 = vpack.c.b16 %v533, %v530
    %v576 = vpack.c.b16 %v534, %v531
    %v577 = vpack.c.b16 %v538, %v535
    %v578 = vpack.c.b16 %v539, %v536
    %v579 = vpack.c.b16 %v540, %v537
    %v580 = vpack.c.b16 %v544, %v541
    %v581 = vpack.c.b16 %v545, %v542
    %v582 = vpack.c.b16 %v546, %v543
    %v583 = vpack.c.b16 %v550, %v547
    %v584 = vpack.c.b16 %v551, %v548
    %v585 = vpack.c.b16 %v552, %v549
    %v586 = vpack.c.b16 %v556, %v553
    %v587 = vpack.c.b16 %v557, %v554
    %v588 = vpack.c.b16 %v558, %v555
    %v589 = vpack.c.b16 %v562, %v559
    %v590 = vpack.c.b16 %v563, %v560
    %v591 = vpack.c.b16 %v564, %v561
    %v592 = vpack.c.b16 %v568, %v565
    %v593 = vpack.c.b16 %v569, %v566
    %v594 = vpack.c.b16 %v570, %v567
    %619 = vmatprep.subr.bf16.mxu0 %v572
    %620 = vmatpush1.bf16.msra.mxu0 %v571
    %621 = vmatprep.subr.bf16.mxu0 %v575
    %622 = vmatpush1.bf16.msra.mxu0 %v574
    %623 = vmatprep.subr.bf16.mxu0 %v578
    %624 = vmatpush1.bf16.msra.mxu0 %v577
    %625 = vmatprep.subr.bf16.mxu0 %v581
    %626 = vmatpush1.bf16.msra.mxu0 %v580
    %627 = vmatprep.subr.bf16.mxu0 %v584
    %628 = vmatpush1.bf16.msra.mxu0 %v583
    %629 = vmatprep.subr.bf16.mxu0 %v587
    %630 = vmatpush1.bf16.msra.mxu0 %v586
    %631 = vmatprep.subr.bf16.mxu0 %v590
    %632 = vmatpush1.bf16.msra.mxu0 %v589
    %633 = vmatprep.subr.bf16.mxu0 %v593
    %634 = vmatpush1.bf16.msra.mxu0 %v592
    %635 = vmatprep.subr.bf16.mxu0 0
    %636 = vmatpush1.bf16.msra.mxu0 0
    %637 = vmatprep.subr.bf16.mxu0 0
    %638 = vmatpush1.bf16.msra.mxu0 0
    %639 = vmatprep.subr.bf16.mxu0 0
    %640 = vmatpush1.bf16.msra.mxu0 0
    %641 = vmatprep.subr.bf16.mxu0 0
    %642 = vmatpush1.bf16.msra.mxu0 0
    %643 = vmatprep.subr.bf16.mxu0 0
    %644 = vmatpush1.bf16.msra.mxu0 0
    %645 = vmatprep.subr.bf16.mxu0 0
    %646 = vmatpush1.bf16.msra.mxu0 0
    %647 = vmatprep.subr.bf16.mxu0 0
    %648 = vmatpush1.bf16.msra.mxu0 0
    %649 = vmatprep.subr.bf16.mxu0 0
    %650 = vmatpush1.bf16.msra.mxu0 0
    %651 = vmatprep.mubr.bf16.mxu0 0
    %652 = vmatmul.mubr.bf16.gmra.mrb[0].mxu0 %v458
    %v653 = vpop.f32.mrb[0].mxu0
    %v654 = vadd.f32 0.0, %v653
    %v655 = vpop.f32.mrb[0].mxu0
    %v656 = vadd.f32 0.0, %v655
    %v657 = vpop.f32.mrb[0].mxu0
    %v658 = vadd.f32 0.0, %v657
    %v659 = vpop.f32.mrb[0].mxu0
    %v660 = vadd.f32 0.0, %v659
    %661 = vdwg.mxu0
    %662 = vmatprep.subr.bf16.mxu0 0
    %663 = vmatpush1.bf16.msra.mxu0 %v573
    %664 = vmatprep.subr.bf16.mxu0 0
    %665 = vmatpush1.bf16.msra.mxu0 %v576
    %666 = vmatprep.subr.bf16.mxu0 0
    %667 = vmatpush1.bf16.msra.mxu0 %v579
    %668 = vmatprep.subr.bf16.mxu0 0
    %669 = vmatpush1.bf16.msra.mxu0 %v582
    %670 = vmatprep.subr.bf16.mxu0 0
    %671 = vmatpush1.bf16.msra.mxu0 %v585
    %672 = vmatprep.subr.bf16.mxu0 0
    %673 = vmatpush1.bf16.msra.mxu0 %v588
    %674 = vmatprep.subr.bf16.mxu0 0
    %675 = vmatpush1.bf16.msra.mxu0 %v591
    %676 = vmatprep.subr.bf16.mxu0 0
    %677 = vmatpush1.bf16.msra.mxu0 %v594
    %678 = vmatprep.subr.bf16.mxu0 0
    %679 = vmatpush1.bf16.msra.mxu0 0
    %680 = vmatprep.subr.bf16.mxu0 0
    %681 = vmatpush1.bf16.msra.mxu0 0
    %682 = vmatprep.subr.bf16.mxu0 0
    %683 = vmatpush1.bf16.msra.mxu0 0
    %684 = vmatprep.subr.bf16.mxu0 0
    %685 = vmatpush1.bf16.msra.mxu0 0
    %686 = vmatprep.subr.bf16.mxu0 0
    %687 = vmatpush1.bf16.msra.mxu0 0
    %688 = vmatprep.subr.bf16.mxu0 0
    %689 = vmatpush1.bf16.msra.mxu0 0
    %690 = vmatprep.subr.bf16.mxu0 0
    %691 = vmatpush1.bf16.msra.mxu0 0
    %692 = vmatprep.subr.bf16.mxu0 0
    %693 = vmatpush1.bf16.msra.mxu0 0
    %694 = vmatprep.mubr.bf16.mxu0 0
    %695 = vmatmul.mubr.bf16.gmra.mrb[0].mxu0 %v458
    %v696 = vpop.f32.mrb[0].mxu0
    %v697 = vadd.f32 0.0, %v696
    %v698 = vpop.f32.mrb[0].mxu0
    %v699 = vpop.f32.mrb[0].mxu0
    %v700 = vadd.f32 0.0, %v699
    %v701 = vpop.f32.mrb[0].mxu0
    %702 = vdwg.mxu0
    %v703 = vrot.slane %v654, 7
    %v704 = vrot.slane %v658, 7
    %v705 = vsel %vm423, %v703, %v704
    %v706 = vsel %vm423, %v704, %v703
    %v707 = vsel %vm428, 0.0, %v706
    %v708 = vsel %vm429, 0.0, %v705
    %v709 = vrot.slane %v697, 1
    %v710 = vrot.slane %v700, 1
    %v711 = vsel %vm434, %v709, %v710
    %v712 = vsel %vm434, %v710, %v709
    %v713 = vsel %vm439, 0.0, %v711
    %v714 = vsel %vm440, 0.0, %v712
    %v715 = vld [vmem:[%s5] sm:$0x1]
    %v717 = vlaneseq
    %v718 = vshrl.u32 %v717, 7
    %v719 = vsub.s32 0, %v718
    %v720 = vrot.slane %v715, %v719
    %v722 = vadd.f32 %v656, %v720
    %v723 = vadd.f32 %v660, %v720
    %v724 = vadd.f32 %v722, %v707
    %v725 = vadd.f32 %v723, %v708
    %v726 = vadd.f32 %v724, %v713
    %v727 = vadd.f32 %v725, %v714
    %v728 = vmax.f32 %v726, 0.0
    %v729 = vmax.f32 %v727, 0.0
    %v730 = vadd.f32 %v728, %v729
    %p731 = scmp.eq.s32.totalorder 0, 0
    // Predicated region
    $region34: #{tpu_custom_call.1} parent=1 // pred_check
      %p732 = pneg %p731
    $region35: #{tpu_custom_call.1} parent=1 // pred_check_branch
      %734 = sbr.rel (%p732) target = $region37
    $region36: #{tpu_custom_call.1} parent=1 // pred_region
      %735 = vst [vmem:[#allocation7] sm:$0xff] 0.0
    $region37: #{tpu_custom_call.1} parent=1 // pred_fallthru
      _
    %v736 = vld [vmem:[#allocation7] sm:$0xff]
    %v737 = vadd.f32 %v736, %v730
    %738 = vst [vmem:[#allocation7] sm:$0xff] %v737
    // Predicated region
    $region38: #{tpu_custom_call.1} parent=1 // pred_check
      _
    $region39: #{tpu_custom_call.1} parent=1 // pred_check_branch
      %740 = sbr.rel (0) target = $region41
    $region40: #{tpu_custom_call.1} parent=1 // pred_region
      %s742 = ssub.s32 128, 128
      %743 = vsyncadd [#allocation4], %s742
      %s745 = sshll.u32 [#allocation7], 4
      %s746 = int_to_ptr.vmem [resolvable:$true] %s745
      %748 = dma.vmem_to_hbm [thread:$0]  %s746, 128, %s6, [#allocation4]
    $region41: #{tpu_custom_call.1} parent=1 // pred_fallthru
      _
    // Predicated region
    $region42: #{tpu_custom_call.1} parent=1 // pred_check
      _
    $region43: #{tpu_custom_call.1} parent=1 // pred_check_branch
      %750 = sbr.rel (0) target = $region45
    $region44: #{tpu_custom_call.1} parent=1 // pred_region
      %751 = dma.done [#allocation4], 128
    $region45: #{tpu_custom_call.1} parent=1 // pred_fallthru
      _
    %752 = vsyncpa [#allocation3], 1
    %753 = vsyncpa [#allocation6], 1
    %754 = vsyncpa [#allocation4], 1

</llo_original>
